<compile_context>
chip_gen: v5e
topology: v5e:2x2
jax: 0.10.0
libtpu: 0.0.40
codegen_flags: <defaults>
</compile_context>

<pallas_src>
import numpy as np
import jax
import jax.numpy as jnp
from jax import lax
from jax.experimental import pallas as pl
from jax.experimental.pallas import tpu as pltpu

KSIZE = 3
EPS = 1e-5


def _round_up(x, m):
    return (x + m - 1) // m * m


# ----------------------------- glue: kernel map ------------------------------
def build_kernel_map(coords_np, dilation=1):
    """coords_np: [N,4] int (b,x,y,z). Returns [K, N] int32 gather indices (-1 = none)."""
    coords = np.asarray(coords_np, dtype=np.int64)
    n = coords.shape[0]
    r = KSIZE // 2
    offs = np.array([(0, dx * dilation, dy * dilation, dz * dilation)
                     for dx in range(-r, r + 1)
                     for dy in range(-r, r + 1)
                     for dz in range(-r, r + 1)], dtype=np.int64)          # [K, 4]

    shift = coords.min(axis=0) - r * dilation
    span = coords.max(axis=0) - shift + r * dilation + 1

    def key(c):
        k = c[..., 0] - shift[0]
        for d in range(1, 4):
            k = k * span[d] + (c[..., d] - shift[d])
        return k

    base_keys = key(coords)                                                # [N]
    order = np.argsort(base_keys, kind="stable")
    sorted_keys = base_keys[order]

    nbr = coords[None, :, :] + offs[:, None, :]                            # [K, N, 4]
    q = key(nbr)                                                           # [K, N]
    pos = np.clip(np.searchsorted(sorted_keys, q), 0, n - 1)
    found = sorted_keys[pos] == q
    return np.where(found, order[pos], -1).astype(np.int32)


# --------------------------- hardware-aware sizing ----------------------------
def _vmem_limit_bytes():
    phys = 64 * 1024 * 1024                         # conservative fallback (v7x-sized)
    try:
        info = pltpu.get_tpu_info()
        phys = int(getattr(info, "vmem_capacity_bytes", phys))
    except Exception:
        pass
    # ~25% headroom; cap the request even on 128 MiB parts.
    return int(min(phys * 3 // 4, 100 * 1024 * 1024))


def _shrink_tile_for_vmem(tile_n, kc_eff, cout_pad, vmem_limit):
    """Shrink the conv row tile until the double-buffered working set fits the budget."""
    budget = int(vmem_limit * 0.75)
    w_bytes = kc_eff * cout_pad * 2                 # bf16 resident weight (x2: dead buffer)

    def need(t):
        return (2 * t * kc_eff * 2                  # double-buffered gathered (bf16)
                + 2 * t * cout_pad * 2              # double-buffered conv_out (bf16)
                + 2 * w_bytes
                + 2 * 8 * cout_pad * 4)             # per-tile stats stripes (f32)

    while tile_n > 128 and need(tile_n) > budget:
        tile_n = max(128, _round_up(tile_n // 2, 8))
    return tile_n


def _bn_tile(n_pad, tile_n, target):
    """Largest multiple of tile_n that divides n_pad and is <= target (mem-bound pass)."""
    grid_n = n_pad // tile_n
    best = tile_n
    for d in range(1, grid_n + 1):
        if grid_n % d == 0 and tile_n * d <= target:
            best = max(best, tile_n * d)
    return best


# ----------------------------- Pallas kernels --------------------------------
def conv_bn_stats_kernel(g_ref, w_ref, o_ref, stats_ref):
    """Sparse conv as a single deep MXU contraction over the K*Cin axis, plus per-tile
    BN partial statistics (sum in stripe row 0, sum-of-squares in row 1) taken from the
    f32 accumulation before the bf16 store. Grid axis is fully parallel."""
    y = jnp.dot(g_ref[...], w_ref[...], preferred_element_type=jnp.float32)
    o_ref[...] = y.astype(o_ref.dtype)
    s = jnp.sum(y, axis=0, keepdims=True)            # [1, cout_pad] (XLU, off MXU path)
    q = jnp.sum(y * y, axis=0, keepdims=True)        # [1, cout_pad]
    row = lax.broadcasted_iota(jnp.int32, (8, y.shape[-1]), 0)
    stats_ref[...] = jnp.where(row == 0, s, jnp.where(row == 1, q, 0.0))


def bn_relu_kernel(y_ref, scale_ref, shift_ref, o_ref):
    """Fused normalize + affine + ReLU. scale/shift are precomputed [1, Cout_pad] f32;
    conv_out is read as bf16 and upcast so the BN math stays f32."""
    y = y_ref[...].astype(jnp.float32)
    o_ref[...] = jnp.maximum(y * scale_ref[...] + shift_ref[...], 0.0).astype(o_ref.dtype)


# ------------------------------- wrapper --------------------------------------
def basic_sparse_block(feats, kmap, weight, gamma, beta, *,
                       tile_n=512, tile_bn=1024, compute_dtype=jnp.bfloat16):
    """feats [N,Cin] f32, kmap [K,N] i32, weight [K,Cin,Cout] f32, gamma/beta [1,Cout] f32."""
    n, cin = feats.shape
    k, _, cout = weight.shape

    kc = k * cin
    kc_pad = _round_up(kc, 128)          # lane-aligned MXU contraction depth (if foldable)
    cout_pad = _round_up(cout, 128)      # lane-dense output stores

    # Fold the contraction-depth (lane) padding into the gather as extra zero-row taps
    # whenever Cin divides the pad; otherwise keep the exact depth (full-dim block is legal).
    extra_taps = (kc_pad - kc) // cin if (kc_pad - kc) % cin == 0 else 0
    taps = k + extra_taps
    kc_eff = taps * cin

    vmem_limit = _vmem_limit_bytes()
    tile_n = min(tile_n, max(128, _round_up(n, 128)))
    tile_n = _shrink_tile_for_vmem(tile_n, kc_eff, cout_pad, vmem_limit)
    n_pad = _round_up(n, tile_n)
    grid_n = n_pad // tile_n
    tile_bn = _bn_tile(n_pad, tile_n, tile_bn)

    # --- glue: ONE zero-row gather producing the final bf16 [n_pad, kc_eff] layout ---
    feats_z = jnp.concatenate(
        [feats.astype(compute_dtype), jnp.zeros((1, cin), compute_dtype)], axis=0)
    idx = jnp.where(kmap >= 0, kmap, n).astype(jnp.int32).T               # [n, K]
    if extra_taps:
        idx = jnp.concatenate(
            [idx, jnp.full((n, extra_taps), n, jnp.int32)], axis=1)       # [n, taps]
    if n_pad > n:
        idx = jnp.concatenate(
            [idx, jnp.full((n_pad - n, taps), n, jnp.int32)], axis=0)     # [n_pad, taps]
    gathered = jnp.take(feats_z, idx, axis=0).reshape(n_pad, kc_eff)      # bf16

    w2 = weight.reshape(kc, cout).astype(compute_dtype)
    w2 = jnp.pad(w2, ((0, kc_eff - kc), (0, cout_pad - cout)))            # tiny, resident

    gamma_p = jnp.pad(gamma.astype(jnp.float32), ((0, 0), (0, cout_pad - cout)))
    beta_p = jnp.pad(beta.astype(jnp.float32), ((0, 0), (0, cout_pad - cout)))

    # --- 1) sparse conv (deep MXU contraction) + per-tile BN partial stats ---
    conv_out, stats = pl.pallas_call(
        conv_bn_stats_kernel,
        out_shape=(jax.ShapeDtypeStruct((n_pad, cout_pad), compute_dtype),   # bf16 intermediate
                   jax.ShapeDtypeStruct((grid_n * 8, cout_pad), jnp.float32)),
        grid=(grid_n,),
        in_specs=[
            pl.BlockSpec((tile_n, kc_eff), lambda i: (i, 0)),
            pl.BlockSpec((kc_eff, cout_pad), lambda i: (0, 0)),           # weight resident
        ],
        out_specs=(pl.BlockSpec((tile_n, cout_pad), lambda i: (i, 0)),
                   pl.BlockSpec((8, cout_pad), lambda i: (i, 0))),
        compiler_params=pltpu.CompilerParams(
            dimension_semantics=("parallel",),       # per-tile stats -> megacore-friendly
            vmem_limit_bytes=vmem_limit),
    )(gathered, w2)

    # --- 2) hoisted scale/shift (tiny; padded rows/channels contribute exactly zero) ---
    totals = stats.reshape(grid_n, 8, cout_pad).sum(axis=0)               # [8, cout_pad]
    ch_sum, ch_sq = totals[0:1, :], totals[1:2, :]
    inv_n = jnp.float32(1.0 / n)
    mean = ch_sum * inv_n
    var = jnp.maximum(ch_sq * inv_n - mean * mean, 0.0)   # clamp against cancellation
    inv_std = lax.rsqrt(var + EPS)
    scale = gamma_p * inv_std
    shift = beta_p - mean * scale

    # --- 3) fused normalize + affine + ReLU (mem-bound; large lane-dense tiles) ---
    out_pad = pl.pallas_call(
        bn_relu_kernel,
        out_shape=jax.ShapeDtypeStruct((n_pad, cout_pad), jnp.float32),
        grid=(n_pad // tile_bn,),
        in_specs=[
            pl.BlockSpec((tile_bn, cout_pad), lambda i: (i, 0)),
            pl.BlockSpec((1, cout_pad), lambda i: (0, 0)),
            pl.BlockSpec((1, cout_pad), lambda i: (0, 0)),
        ],
        out_specs=pl.BlockSpec((tile_bn, cout_pad), lambda i: (i, 0)),
        compiler_params=pltpu.CompilerParams(
            dimension_semantics=("parallel",),
            vmem_limit_bytes=vmem_limit),
    )(conv_out, scale, shift)

    return out_pad[:n, :cout]


# ------------------------------ reference -------------------------------------
def reference(feats, kmap, weight, gamma, beta, compute_dtype=jnp.bfloat16):
    """Matches the kernel's compute dtype for the conv (bf16 MXU inputs, f32 accumulation)
    but keeps the conv result in f32 for normalization; the kernel additionally stores the
    conv intermediate in bf16, so tolerances below are a few ulps of bf16 / BN std."""
    safe_idx = jnp.where(kmap >= 0, kmap, 0)
    gathered = jnp.take(feats, safe_idx, axis=0) * (kmap >= 0)[..., None].astype(feats.dtype)
    y = jnp.einsum("knc,kcd->nd",
                   gathered.astype(compute_dtype), weight.astype(compute_dtype),
                   preferred_element_type=jnp.float32)
    mean = y.mean(axis=0, keepdims=True)
    var = y.var(axis=0, keepdims=True)
    out = (y - mean) * lax.rsqrt(var + EPS) * gamma + beta
    return jnp.maximum(out, 0.0)


if __name__ == "__main__":
    # Small sparse problem: batch=2, 6^3 voxel grid, 32 active voxels per batch -> N=64.
    BATCH, GRID, PTS_PER_B = 2, 6, 32
    CIN, COUT = 4, 8
    N = BATCH * PTS_PER_B

    key = jax.random.PRNGKey(0)
    k_coords, k_feat, k_w = jax.random.split(key, 3)

    # deterministic active-voxel coordinates (unique per batch)
    coords_list = []
    for b in range(BATCH):
        perm = np.asarray(jax.random.permutation(jax.random.fold_in(k_coords, b),
                                                 GRID ** 3))[:PTS_PER_B]
        xs, ys, zs = perm // (GRID * GRID), (perm // GRID) % GRID, perm % GRID
        coords_list.append(np.stack([np.full_like(xs, b), xs, ys, zs], axis=1))
    coords_np = np.concatenate(coords_list, axis=0).astype(np.int32)      # [N, 4]

    kmap = jnp.asarray(build_kernel_map(coords_np))                       # [27, N]

    feats = jax.random.normal(k_feat, (N, CIN), dtype=jnp.float32)
    fan_in = KSIZE ** 3 * CIN
    weight = (jax.random.normal(k_w, (KSIZE ** 3, CIN, COUT), dtype=jnp.float32)
              * np.sqrt(2.0 / fan_in).astype(np.float32))
    gamma = jnp.ones((1, COUT), dtype=jnp.float32)    # BatchNorm default init
    beta = jnp.zeros((1, COUT), dtype=jnp.float32)

    out = basic_sparse_block(feats, kmap, weight, gamma, beta)
    out = jax.block_until_ready(out)

    ref = jax.block_until_ready(reference(feats, kmap, weight, gamma, beta))
    # Tolerance covers the bf16 storage of the conv intermediate (immediately normalized);
    # true f32 torch semantics differ by a similar bf16-level amount (noted limitation).
    np.testing.assert_allclose(np.asarray(out), np.asarray(ref), rtol=3e-2, atol=3e-2)

    print("KERNEL_OK")
</pallas_src>

<mosaic_0001>
module attributes {stable_mosaic.version = 11 : i64} {
  func.func @conv_bn_stats_kernel(%arg0: i32, %arg1: memref<128x128xbf16, #tpu.memory_space<vmem>>, %arg2: memref<128x128xbf16, #tpu.memory_space<vmem>>, %arg3: memref<128x128xbf16, #tpu.memory_space<vmem>>, %arg4: memref<8x128xf32, #tpu.memory_space<vmem>>) attributes {dimension_semantics = [#tpu.dimension_semantics<parallel>], iteration_bounds = array<i64: 1>, scalar_prefetch = 0 : i64, scratch_operands = 0 : i64, tpu.core_type = #tpu.core_type<tc>, window_params = [{transform_indices = @transform_0, window_bounds = array<i64: 128, 128>}, {pipeline_mode = #tpu.pipeline_mode<synchronous>, transform_indices = @transform_1, window_bounds = array<i64: 128, 128>}, {transform_indices = @transform_2, window_bounds = array<i64: 128, 128>}, {transform_indices = @transform_3, window_bounds = array<i64: 8, 128>}]} {
    %c0 = arith.constant 0 : index
    %c0_0 = arith.constant 0 : index
    %0 = vector.load %arg1[%c0, %c0_0] : memref<128x128xbf16, #tpu.memory_space<vmem>>, vector<128x128xbf16>
    %c0_1 = arith.constant 0 : index
    %c0_2 = arith.constant 0 : index
    %1 = vector.load %arg2[%c0_1, %c0_2] : memref<128x128xbf16, #tpu.memory_space<vmem>>, vector<128x128xbf16>
    %cst = arith.constant dense<0.000000e+00> : vector<128x128xf32>
    %2 = tpu.matmul %0, %1, %cst {dimension_numbers = #tpu.dot_dimension_numbers<[1], [0], [0], [1], [0, 0, 1, 1], [], []>} : vector<128x128xbf16>, vector<128x128xbf16>, vector<128x128xf32> -> vector<128x128xf32>
    %3 = arith.truncf %2 : vector<128x128xf32> to vector<128x128xbf16>
    %c0_3 = arith.constant 0 : index
    %c0_4 = arith.constant 0 : index
    %4 = vector.load %arg3[%c0_3, %c0_4] : memref<128x128xbf16, #tpu.memory_space<vmem>>, vector<128x128xbf16>
    tpu.vector_store %arg3[%c0_3, %c0_4], %3 {strides = array<i32>} : memref<128x128xbf16, #tpu.memory_space<vmem>>, vector<128x128xbf16>,
    %cst_5 = arith.constant dense<0.000000e+00> : vector<128xf32>
    %5 = vector.multi_reduction <add>, %2, %cst_5 [0] : vector<128x128xf32> to vector<128xf32>
    %6 = vector.shape_cast %5 : vector<128xf32> to vector<1x128xf32>
    %7 = arith.mulf %2, %2 : vector<128x128xf32>
    %cst_6 = arith.constant dense<0.000000e+00> : vector<128xf32>
    %8 = vector.multi_reduction <add>, %7, %cst_6 [0] : vector<128x128xf32> to vector<128xf32>
    %9 = vector.shape_cast %8 : vector<128xf32> to vector<1x128xf32>
    %10 = tpu.iota {dimensions = array<i32: 0>} : vector<8x128xi32>
    %c0_i32 = arith.constant 0 : i32
    %11 = vector.broadcast %c0_i32 : i32 to vector<8x128xi32>
    %12 = arith.cmpi eq, %10, %11 : vector<8x128xi32>
    %c1_i32 = arith.constant 1 : i32
    %13 = vector.broadcast %c1_i32 : i32 to vector<8x128xi32>
    %14 = arith.cmpi eq, %10, %13 : vector<8x128xi32>
    %cst_7 = arith.constant 0.000000e+00 : f32
    %15 = vector.shape_cast %9 : vector<1x128xf32> to vector<1x128xf32>
    %16 = vector.broadcast %15 : vector<1x128xf32> to vector<8x128xf32>
    %17 = vector.broadcast %cst_7 : f32 to vector<8x128xf32>
    %18 = arith.select %14, %16, %17 : vector<8x128xi1>, vector<8x128xf32>
    %19 = vector.shape_cast %6 : vector<1x128xf32> to vector<1x128xf32>
    %20 = vector.broadcast %19 : vector<1x128xf32> to vector<8x128xf32>
    %21 = arith.select %12, %20, %18 : vector<8x128xi1>, vector<8x128xf32>
    %c0_8 = arith.constant 0 : index
    %c0_9 = arith.constant 0 : index
    %22 = vector.load %arg4[%c0_8, %c0_9] : memref<8x128xf32, #tpu.memory_space<vmem>>, vector<8x128xf32>
    tpu.vector_store %arg4[%c0_8, %c0_9], %21 {strides = array<i32>} : memref<8x128xf32, #tpu.memory_space<vmem>>, vector<8x128xf32>,
    return
  }
  func.func @transform_0(%arg0: i32) -> (i32, i32) {
    %c0_i32 = arith.constant 0 : i32
    %c0_i32_0 = arith.constant 0 : i32
    return %arg0, %c0_i32 : i32, i32
  }
  func.func @transform_1(%arg0: i32) -> (i32, i32) {
    %c0_i32 = arith.constant 0 : i32
    %c0_i32_0 = arith.constant 0 : i32
    %c0_i32_1 = arith.constant 0 : i32
    return %c0_i32, %c0_i32_0 : i32, i32
  }
  func.func @transform_2(%arg0: i32) -> (i32, i32) {
    %c0_i32 = arith.constant 0 : i32
    %c0_i32_0 = arith.constant 0 : i32
    return %arg0, %c0_i32 : i32, i32
  }
  func.func @transform_3(%arg0: i32) -> (i32, i32) {
    %c0_i32 = arith.constant 0 : i32
    %c0_i32_0 = arith.constant 0 : i32
    return %arg0, %c0_i32 : i32, i32
  }
}

</mosaic_0001>

<llo_original>
// kernel: tpu_custom_call.1
$region0: #{tpu_custom_call.1}
  #allocation0 [shape = 'u32[]', space=smem, size = 0x4, offset = 0x4, fixed_abs, tag = 'smem constant byte address 0x4 - core index']
  #allocation1 [shape = 'u32[72,128]{1,0:T(1,128)}', space=vmem, size = 0x9000, scoped, tag = 'internal scratch']
  %s0 = inlined_call_operand.hbm [shape: bf16[128,128], index: 0, kind: input, shape index: {}]
  %s1 = inlined_call_operand.hbm [shape: bf16[128,128], index: 1, kind: input, shape index: {}]
  %s2 = inlined_call_operand.hbm [shape: bf16[128,128], index: 2, kind: output, shape index: {0}]
  %s3 = inlined_call_operand.hbm [shape: f32[8,128], index: 3, kind: output, shape index: {1}]
  %4 = xla_tuple %s2, %s3
  %s5 = sld [smem:[#allocation0]]
  $region34: #{tpu_custom_call.1} parent=0
    _
  %s7 = ssub.s32 1, %s5
  %s8 = scalar_select 0, %s7, %s5
  $region1: #{tpu_custom_call.1} parent=0
    #allocation2 [shape = 'u8[32768]{0}', space=vmem, size = 0x8000, scoped, tag = 'input window, operand 0, single buffered']
    #allocation3 [shape = 's32[1]{0}', space=sflag, size = 0x4, scoped, tag = 'scoped memory for tpu_custom_call.1']
    #allocation4 [shape = 's32[1]{0}', space=sflag, size = 0x4, scoped, tag = 'scoped memory for tpu_custom_call.1']
    #allocation5 [shape = 'u8[32768]{0}', space=vmem, size = 0x8000, scoped, tag = 'input window, operand 1, single buffered']
    #allocation6 [shape = 's32[1]{0}', space=sflag, size = 0x4, scoped, tag = 'scoped memory for tpu_custom_call.1']
    #allocation7 [shape = 'u8[32768]{0}', space=vmem, size = 0x8000, scoped, tag = 'output window, operand 0, single buffered']
    #allocation8 [shape = 'u8[4096]{0}', space=vmem, size = 0x1000, scoped, tag = 'output window, operand 1, single buffered']
    #allocation9 [shape = 's32[1]{0}', space=sflag, size = 0x4, scoped, tag = 'scoped memory for tpu_custom_call.1']
    %9 = vsyncpa [#allocation3], 0
    %10 = vsyncpa [#allocation6], 0
    %11 = vsyncpa [#allocation4], 0
    %12 = vsyncpa [#allocation9], 0
    // Predicated region
    $region2: #{tpu_custom_call.1} parent=1 // pred_check
      _
    $region3: #{tpu_custom_call.1} parent=1 // pred_check_branch
      %14 = sbr.rel (0) target = $region5
    $region4: #{tpu_custom_call.1} parent=1 // pred_region
      %16 = vsyncadd [#allocation3], 0
      %s17 = sshll.u32 %s0, 4
      %s18 = int_to_ptr.hbm [resolvable:$true] %s17
      %s19 = sshll.u32 [#allocation2], 4
      %s20 = int_to_ptr.vmem [resolvable:$true] %s19
      %25 = dma.hbm_to_vmem [thread:$0]  %s18, 1024, %s20, [#allocation3], 64, 64, 4
    $region5: #{tpu_custom_call.1} parent=1 // pred_fallthru
      _
    // Predicated region
    $region6: #{tpu_custom_call.1} parent=1 // pred_check
      _
    $region7: #{tpu_custom_call.1} parent=1 // pred_check_branch
      %27 = sbr.rel (0) target = $region9
    $region8: #{tpu_custom_call.1} parent=1 // pred_region
      %29 = vsyncadd [#allocation6], 0
      %s30 = sshll.u32 %s1, 4
      %s31 = int_to_ptr.hbm [resolvable:$true] %s30
      %s32 = sshll.u32 [#allocation5], 4
      %s33 = int_to_ptr.vmem [resolvable:$true] %s32
      %38 = dma.hbm_to_vmem [thread:$0]  %s31, 1024, %s33, [#allocation6], 64, 64, 4
    $region9: #{tpu_custom_call.1} parent=1 // pred_fallthru
      _
    // Predicated region
    $region10: #{tpu_custom_call.1} parent=1 // pred_check
      _
    $region11: #{tpu_custom_call.1} parent=1 // pred_check_branch
      %40 = sbr.rel (0) target = $region13
    $region12: #{tpu_custom_call.1} parent=1 // pred_region
      %42 = dma.done [#allocation3], 1024
    $region13: #{tpu_custom_call.1} parent=1 // pred_fallthru
      _
    // Predicated region
    $region14: #{tpu_custom_call.1} parent=1 // pred_check
      _
    $region15: #{tpu_custom_call.1} parent=1 // pred_check_branch
      %44 = sbr.rel (0) target = $region17
    $region16: #{tpu_custom_call.1} parent=1 // pred_region
      %46 = dma.done [#allocation6], 1024
    $region17: #{tpu_custom_call.1} parent=1 // pred_fallthru
      _
    %v47 = vld [vmem:[#allocation2] sm:$0xf]
    %v48 = vld [vmem:[#allocation2 + $0x4] sm:$0xf]
    %v49 = vld [vmem:[#allocation2 + $0x8] sm:$0xf]
    %v50 = vld [vmem:[#allocation2 + $0xc] sm:$0xf]
    %v51 = vld [vmem:[#allocation2 + $0x10] sm:$0xf]
    %v52 = vld [vmem:[#allocation2 + $0x14] sm:$0xf]
    %v53 = vld [vmem:[#allocation2 + $0x18] sm:$0xf]
    %v54 = vld [vmem:[#allocation2 + $0x1c] sm:$0xf]
    %v55 = vld [vmem:[#allocation2 + $0x20] sm:$0xf]
    %v56 = vld [vmem:[#allocation2 + $0x24] sm:$0xf]
    %v57 = vld [vmem:[#allocation2 + $0x28] sm:$0xf]
    %v58 = vld [vmem:[#allocation2 + $0x2c] sm:$0xf]
    %v59 = vld [vmem:[#allocation2 + $0x30] sm:$0xf]
    %v60 = vld [vmem:[#allocation2 + $0x34] sm:$0xf]
    %v61 = vld [vmem:[#allocation2 + $0x38] sm:$0xf]
    %v62 = vld [vmem:[#allocation2 + $0x3c] sm:$0xf]
    %v63 = vld [vmem:[#allocation5] sm:$0xf]
    %v64 = vld [vmem:[#allocation5 + $0x4] sm:$0xf]
    %v65 = vld [vmem:[#allocation5 + $0x8] sm:$0xf]
    %v66 = vld [vmem:[#allocation5 + $0xc] sm:$0xf]
    %v67 = vld [vmem:[#allocation5 + $0x10] sm:$0xf]
    %v68 = vld [vmem:[#allocation5 + $0x14] sm:$0xf]
    %v69 = vld [vmem:[#allocation5 + $0x18] sm:$0xf]
    %v70 = vld [vmem:[#allocation5 + $0x1c] sm:$0xf]
    %v71 = vld [vmem:[#allocation5 + $0x20] sm:$0xf]
    %v72 = vld [vmem:[#allocation5 + $0x24] sm:$0xf]
    %v73 = vld [vmem:[#allocation5 + $0x28] sm:$0xf]
    %v74 = vld [vmem:[#allocation5 + $0x2c] sm:$0xf]
    %v75 = vld [vmem:[#allocation5 + $0x30] sm:$0xf]
    %v76 = vld [vmem:[#allocation5 + $0x34] sm:$0xf]
    %v77 = vld [vmem:[#allocation5 + $0x38] sm:$0xf]
    %v78 = vld [vmem:[#allocation5 + $0x3c] sm:$0xf]
    %v95 = vunpack.c.l.b16 %v47
    %v96 = vunpack.c.l.b16 %v48
    %v97 = vunpack.c.l.b16 %v49
    %v98 = vunpack.c.l.b16 %v50
    %v99 = vunpack.c.l.b16 %v51
    %v100 = vunpack.c.l.b16 %v52
    %v101 = vunpack.c.l.b16 %v53
    %v102 = vunpack.c.l.b16 %v54
    %v103 = vunpack.c.l.b16 %v55
    %v104 = vunpack.c.l.b16 %v56
    %v105 = vunpack.c.l.b16 %v57
    %v106 = vunpack.c.l.b16 %v58
    %v107 = vunpack.c.l.b16 %v59
    %v108 = vunpack.c.l.b16 %v60
    %v109 = vunpack.c.l.b16 %v61
    %v110 = vunpack.c.l.b16 %v62
    %v111 = vpack.c.b16 %v96, %v95
    %v112 = vpack.c.b16 %v98, %v97
    %v113 = vpack.c.b16 %v100, %v99
    %v114 = vpack.c.b16 %v102, %v101
    %v115 = vpack.c.b16 %v104, %v103
    %v116 = vpack.c.b16 %v106, %v105
    %v117 = vpack.c.b16 %v108, %v107
    %v118 = vpack.c.b16 %v110, %v109
    %v143 = vunpack.c.l.b16 %v63
    %v144 = vunpack.c.l.b16 %v64
    %v145 = vunpack.c.l.b16 %v65
    %v146 = vunpack.c.l.b16 %v66
    %v147 = vunpack.c.l.b16 %v67
    %v148 = vunpack.c.l.b16 %v68
    %v149 = vunpack.c.l.b16 %v69
    %v150 = vunpack.c.l.b16 %v70
    %v151 = vunpack.c.l.b16 %v71
    %v152 = vunpack.c.l.b16 %v72
    %v153 = vunpack.c.l.b16 %v73
    %v154 = vunpack.c.l.b16 %v74
    %v155 = vunpack.c.l.b16 %v75
    %v156 = vunpack.c.l.b16 %v76
    %v157 = vunpack.c.l.b16 %v77
    %v158 = vunpack.c.l.b16 %v78
    %v159 = vpack.c.b16 %v144, %v143
    %v160 = vpack.c.b16 %v146, %v145
    %v161 = vpack.c.b16 %v148, %v147
    %v162 = vpack.c.b16 %v150, %v149
    %v163 = vpack.c.b16 %v152, %v151
    %v164 = vpack.c.b16 %v154, %v153
    %v165 = vpack.c.b16 %v156, %v155
    %v166 = vpack.c.b16 %v158, %v157
    %175 = vmatpush.bf16.msra.mxu0 %v166
    %176 = vmatpush.bf16.msra.mxu0 %v165
    %177 = vmatpush.bf16.msra.mxu0 %v164
    %178 = vmatpush.bf16.msra.mxu0 %v163
    %179 = vmatpush.bf16.msra.mxu0 %v162
    %180 = vmatpush.bf16.msra.mxu0 %v161
    %181 = vmatpush.bf16.msra.mxu0 %v160
    %182 = vmatpush.bf16.msra.mxu0 %v159
    %183 = vmatmul.bf16.gmra.mxu0 %v111
    %v184 = vpop.f32.mrf.mxu0
    %v185 = vadd.f32 0.0, %v184
    %v186 = vpop.f32.mrf.mxu0
    %v187 = vadd.f32 0.0, %v186
    %188 = vmatmul.bf16.gmra.mxu0 %v112
    %v189 = vpop.f32.mrf.mxu0
    %v190 = vadd.f32 0.0, %v189
    %v191 = vpop.f32.mrf.mxu0
    %v192 = vadd.f32 0.0, %v191
    %193 = vmatmul.bf16.gmra.mxu0 %v113
    %v194 = vpop.f32.mrf.mxu0
    %v195 = vadd.f32 0.0, %v194
    %v196 = vpop.f32.mrf.mxu0
    %v197 = vadd.f32 0.0, %v196
    %198 = vmatmul.bf16.gmra.mxu0 %v114
    %v199 = vpop.f32.mrf.mxu0
    %v200 = vadd.f32 0.0, %v199
    %v201 = vpop.f32.mrf.mxu0
    %v202 = vadd.f32 0.0, %v201
    %203 = vmatmul.bf16.gmra.mxu0 %v115
    %v204 = vpop.f32.mrf.mxu0
    %v205 = vadd.f32 0.0, %v204
    %v206 = vpop.f32.mrf.mxu0
    %v207 = vadd.f32 0.0, %v206
    %208 = vmatmul.bf16.gmra.mxu0 %v116
    %v209 = vpop.f32.mrf.mxu0
    %v210 = vadd.f32 0.0, %v209
    %v211 = vpop.f32.mrf.mxu0
    %v212 = vadd.f32 0.0, %v211
    %213 = vmatmul.bf16.gmra.mxu0 %v117
    %v214 = vpop.f32.mrf.mxu0
    %v215 = vadd.f32 0.0, %v214
    %v216 = vpop.f32.mrf.mxu0
    %v217 = vadd.f32 0.0, %v216
    %218 = vmatmul.bf16.gmra.mxu0 %v118
    %v219 = vpop.f32.mrf.mxu0
    %v220 = vadd.f32 0.0, %v219
    %v221 = vpop.f32.mrf.mxu0
    %v222 = vadd.f32 0.0, %v221
    %223 = vdwg.mxu0
    %v224 = vpack.c.bf16 %v185, %v185
    %v225 = vpack.c.bf16 %v187, %v187
    %v226 = vpack.c.bf16 %v190, %v190
    %v227 = vpack.c.bf16 %v192, %v192
    %v228 = vpack.c.bf16 %v195, %v195
    %v229 = vpack.c.bf16 %v197, %v197
    %v230 = vpack.c.bf16 %v200, %v200
    %v231 = vpack.c.bf16 %v202, %v202
    %v232 = vpack.c.bf16 %v205, %v205
    %v233 = vpack.c.bf16 %v207, %v207
    %v234 = vpack.c.bf16 %v210, %v210
    %v235 = vpack.c.bf16 %v212, %v212
    %v236 = vpack.c.bf16 %v215, %v215
    %v237 = vpack.c.bf16 %v217, %v217
    %v238 = vpack.c.bf16 %v220, %v220
    %v239 = vpack.c.bf16 %v222, %v222
    %240 = vst [vmem:[#allocation7] sm:$0xf] %v224
    %241 = vst [vmem:[#allocation7 + $0x4] sm:$0xf] %v225
    %242 = vst [vmem:[#allocation7 + $0x8] sm:$0xf] %v226
    %243 = vst [vmem:[#allocation7 + $0xc] sm:$0xf] %v227
    %244 = vst [vmem:[#allocation7 + $0x10] sm:$0xf] %v228
    %245 = vst [vmem:[#allocation7 + $0x14] sm:$0xf] %v229
    %246 = vst [vmem:[#allocation7 + $0x18] sm:$0xf] %v230
    %247 = vst [vmem:[#allocation7 + $0x1c] sm:$0xf] %v231
    %248 = vst [vmem:[#allocation7 + $0x20] sm:$0xf] %v232
    %249 = vst [vmem:[#allocation7 + $0x24] sm:$0xf] %v233
    %250 = vst [vmem:[#allocation7 + $0x28] sm:$0xf] %v234
    %251 = vst [vmem:[#allocation7 + $0x2c] sm:$0xf] %v235
    %252 = vst [vmem:[#allocation7 + $0x30] sm:$0xf] %v236
    %253 = vst [vmem:[#allocation7 + $0x34] sm:$0xf] %v237
    %254 = vst [vmem:[#allocation7 + $0x38] sm:$0xf] %v238
    %255 = vst [vmem:[#allocation7 + $0x3c] sm:$0xf] %v239
    %v256 = vadd.f32 %v185, %v187
    %v257 = vadd.f32 %v256, %v190
    %v258 = vadd.f32 %v257, %v192
    %v259 = vadd.f32 %v258, %v195
    %v260 = vadd.f32 %v259, %v197
    %v261 = vadd.f32 %v260, %v200
    %v262 = vadd.f32 %v261, %v202
    %v263 = vadd.f32 %v262, %v205
    %v264 = vadd.f32 %v263, %v207
    %v265 = vadd.f32 %v264, %v210
    %v266 = vadd.f32 %v265, %v212
    %v267 = vadd.f32 %v266, %v215
    %v268 = vadd.f32 %v267, %v217
    %v269 = vadd.f32 %v268, %v220
    %v270 = vadd.f32 %v269, %v222
    %v271 = vrot.slane %v270, 4
    %v272 = vadd.f32 %v270, %v271
    %v273 = vrot.slane %v272, 2
    %v274 = vadd.f32 %v272, %v273
    %v275 = vrot.slane %v274, 1
    %v276 = vadd.f32 %v274, %v275
    %v277 = vmul.f32 %v185, %v185
    %v278 = vmul.f32 %v187, %v187
    %v279 = vmul.f32 %v190, %v190
    %v280 = vmul.f32 %v192, %v192
    %v281 = vmul.f32 %v195, %v195
    %v282 = vmul.f32 %v197, %v197
    %v283 = vmul.f32 %v200, %v200
    %v284 = vmul.f32 %v202, %v202
    %v285 = vmul.f32 %v205, %v205
    %v286 = vmul.f32 %v207, %v207
    %v287 = vmul.f32 %v210, %v210
    %v288 = vmul.f32 %v212, %v212
    %v289 = vmul.f32 %v215, %v215
    %v290 = vmul.f32 %v217, %v217
    %v291 = vmul.f32 %v220, %v220
    %v292 = vmul.f32 %v222, %v222
    %v293 = vadd.f32 %v277, %v278
    %v294 = vadd.f32 %v293, %v279
    %v295 = vadd.f32 %v294, %v280
    %v296 = vadd.f32 %v295, %v281
    %v297 = vadd.f32 %v296, %v282
    %v298 = vadd.f32 %v297, %v283
    %v299 = vadd.f32 %v298, %v284
    %v300 = vadd.f32 %v299, %v285
    %v301 = vadd.f32 %v300, %v286
    %v302 = vadd.f32 %v301, %v287
    %v303 = vadd.f32 %v302, %v288
    %v304 = vadd.f32 %v303, %v289
    %v305 = vadd.f32 %v304, %v290
    %v306 = vadd.f32 %v305, %v291
    %v307 = vadd.f32 %v306, %v292
    %v308 = vrot.slane %v307, 4
    %v309 = vadd.f32 %v307, %v308
    %v310 = vrot.slane %v309, 2
    %v311 = vadd.f32 %v309, %v310
    %v312 = vrot.slane %v311, 1
    %v313 = vadd.f32 %v311, %v312
    %v314 = vlaneseq
    %v315 = vshrl.u32 %v314, 7
    %vm316 = vcmp.eq.s32.totalorder %v315, 0
    %vm317 = vcmp.eq.s32.totalorder %v315, 1
    %v318 = vsel %vm317, %v313, 0.0
    %v319 = vsel %vm316, %v276, %v318
    %320 = vst [vmem:[#allocation8] sm:$0xff] %v319
    // Predicated region
    $region18: #{tpu_custom_call.1} parent=1 // pred_check
      _
    $region19: #{tpu_custom_call.1} parent=1 // pred_check_branch
      %322 = sbr.rel (0) target = $region21
    $region20: #{tpu_custom_call.1} parent=1 // pred_region
      %324 = vsyncadd [#allocation4], 0
      %s325 = sshll.u32 [#allocation7], 4
      %s326 = int_to_ptr.vmem [resolvable:$true] %s325
      %s327 = sshll.u32 %s2, 4
      %s328 = int_to_ptr.hbm [resolvable:$true] %s327
      %333 = dma.vmem_to_hbm [thread:$0]  %s326, 1024, %s328, [#allocation4], 64, 64, 4
    $region21: #{tpu_custom_call.1} parent=1 // pred_fallthru
      _
    // Predicated region
    $region22: #{tpu_custom_call.1} parent=1 // pred_check
      _
    $region23: #{tpu_custom_call.1} parent=1 // pred_check_branch
      %335 = sbr.rel (0) target = $region25
    $region24: #{tpu_custom_call.1} parent=1 // pred_region
      %337 = vsyncadd [#allocation9], 0
      %s339 = sshll.u32 [#allocation8], 4
      %s340 = int_to_ptr.vmem [resolvable:$true] %s339
      %s341 = sshll.u32 %s3, 4
      %s342 = int_to_ptr.hbm [resolvable:$true] %s341
      %344 = dma.vmem_to_hbm [thread:$0]  %s340, 128, %s342, [#allocation9]
    $region25: #{tpu_custom_call.1} parent=1 // pred_fallthru
      _
    // Predicated region
    $region26: #{tpu_custom_call.1} parent=1 // pred_check
      _
    $region27: #{tpu_custom_call.1} parent=1 // pred_check_branch
      %346 = sbr.rel (0) target = $region29
    $region28: #{tpu_custom_call.1} parent=1 // pred_region
      %348 = dma.done [#allocation4], 1024
    $region29: #{tpu_custom_call.1} parent=1 // pred_fallthru
      _
    // Predicated region
    $region30: #{tpu_custom_call.1} parent=1 // pred_check
      _
    $region31: #{tpu_custom_call.1} parent=1 // pred_check_branch
      %350 = sbr.rel (0) target = $region33
    $region32: #{tpu_custom_call.1} parent=1 // pred_region
      %352 = dma.done [#allocation9], 128
    $region33: #{tpu_custom_call.1} parent=1 // pred_fallthru
      _
    %353 = vsyncpa [#allocation3], 1
    %354 = vsyncpa [#allocation6], 1
    %355 = vsyncpa [#allocation4], 1
    %356 = vsyncpa [#allocation9], 1

</llo_original>
